<compile_context>
chip_gen: v6e
topology: v6e:2x2x1
jax: 0.10.0
libtpu: 0.0.40
codegen_flags: <defaults>
</compile_context>

<pallas_src>
import math
import functools

import jax
import jax.numpy as jnp
from jax import lax
from jax.experimental import pallas as pl
from jax.experimental.pallas import tpu as pltpu


# -----------------------------------------------------------------------------
# Helpers
# -----------------------------------------------------------------------------
def _round_up(v, m):
    return ((v + m - 1) // m) * m


# -----------------------------------------------------------------------------
# Kernel
# -----------------------------------------------------------------------------
def _sse_kernel(x_ref, y_ref, o_ref, *, sb, sr, r, tr, n_bgrp, n_rgrp,
                need_mask, unroll):
    """Accumulate per-sample sum-of-squared-difference (8,128) partials.

    x_ref, y_ref: (tb, tr, 128) chunk: tb samples x tr flattened rows (native
                  dtype).  tb = sb*n_bgrp, tr = sr*n_rgrp.
    o_ref:        (tb, 8, 128) f32 SSE-partial accumulator; the output
                  BlockSpec returns the same block across the chunk axis, so
                  it stays resident in VMEM for the whole per-sample reduction.
    """
    k = pl.program_id(1)

    @pl.when(k == 0)
    def _():
        o_ref[...] = jnp.zeros_like(o_ref)

    if need_mask:
        # Valid rows in this chunk (only the last chunk has a tail).
        limit = jnp.minimum(r - k * tr, tr)

    def sq_partial(x, y, r0):
        # Denorm folded: (x*scale+shift) - (y*scale+shift) == scale*(x-y);
        # scale^2 is applied once in the epilogue.
        d = x.astype(jnp.float32) - y.astype(jnp.float32)
        if need_mask:
            rows = r0 + lax.broadcasted_iota(jnp.int32, (1, sr, 1), 1)
            d = jnp.where(rows < limit, d, 0.0)
        d2 = d * d                                        # (sb, sr, 128)
        # Pure-VPU partial reduction: fold sr rows onto the 8 sublanes,
        # keeping every sample's partial separate.
        return jnp.sum(d2.reshape(sb, sr // 8, 8, 128), axis=1)   # (sb,8,128)

    total = n_bgrp * n_rgrp
    if total == 1:
        # sb == tb and sr == tr: whole block in one shot.
        o_ref[...] += sq_partial(x_ref[...], y_ref[...], 0)
    else:
        def body(i, carry):
            bg = i // n_rgrp
            rg = i - bg * n_rgrp
            b0 = pl.multiple_of(bg * sb, sb)
            r0 = pl.multiple_of(rg * sr, sr)
            o_ref[pl.ds(b0, sb), :, :] += sq_partial(
                x_ref[pl.ds(b0, sb), pl.ds(r0, sr), :],
                y_ref[pl.ds(b0, sb), pl.ds(r0, sr), :], r0)
            return carry

        lax.fori_loop(0, total, body, 0, unroll=unroll)


# -----------------------------------------------------------------------------
# Wrapper (mirrors the PyTorch Metrics module forward pass)
# -----------------------------------------------------------------------------
class MetricsPallas:
    def __init__(self, norm_method="mean_std", mean_std_norm=None, min_max_norm=None):
        # (pdb.set_trace() from the reference __init__ is debug-only; skipped.)
        # NOTE: like the reference, min_max_norm is required (used for `diff`).
        self.diff = float(min_max_norm["max"] - min_max_norm["min"])
        self.mean_std_norm = mean_std_norm
        self.min_max_norm = min_max_norm
        self.norm_method = norm_method

        # denorm(v) = v * scale + shift  (shift cancels inside x_d - y_d)
        if norm_method == "mean_std":
            self.scale = float(mean_std_norm["std"])
        elif norm_method == "min_max":
            self.scale = float(min_max_norm["max"] - min_max_norm["min"])
        else:
            self.scale = 1.0

        # 10*log10(diff^2), precomputed as a Python float.
        self._psnr_const = 10.0 * math.log10(self.diff ** 2.0)

        # Bytes of combined x+y streamed per grid step (~HBM roofline lever).
        self._target_step_bytes = 8 << 20
        # Cap on live sub-slab rows per sample-group (~512 KiB f32 live).
        self._sub_rows = 1024

    def __call__(self, output, target):
        return self.psnr(output, target)

    def psnr(self, output, target):
        assert output.shape == target.shape and output.ndim == 5
        n = output.shape[0]
        m = 1
        for s in output.shape[1:]:
            m *= s

        dtype = output.dtype
        itemsize = jnp.dtype(dtype).itemsize
        # Packed sublane tile of the input dtype (8 f32, 16 bf16, 32 i8/fp8).
        row_tile = 8 * max(1, 4 // itemsize)
        sub_rows = self._sub_rows
        target_rows = max(row_tile,
                          self._target_step_bytes // (2 * 128 * itemsize))

        # Flatten each sample; pad the lane axis to 128 if needed (padding
        # both x and y with identical zeros is SSE-neutral).
        m_pad = _round_up(m, 128)
        x = output.reshape(n, m)
        y = target.reshape(n, m)
        if m_pad != m:
            x = jnp.pad(x, ((0, 0), (0, m_pad - m)))
            y = jnp.pad(y, ((0, 0), (0, m_pad - m)))
        r = m_pad // 128
        x = x.reshape(n, r, 128)
        y = y.reshape(n, r, 128)

        # --- tile selection (bytes-based, divisor-free) ----------------------
        rpad = _round_up(r, row_tile)
        sr = sub_rows if rpad >= sub_rows else rpad          # sub-slab rows
        tr = min(_round_up(rpad, sr),
                 max(sr, (target_rows // sr) * sr))          # rows/sample/step
        num_chunks = (r + tr - 1) // tr
        tb = max(1, min(target_rows // tr, n))               # samples/step
        sb = max(1, min(sub_rows // sr, tb))                 # samples/sub-slab
        tb = max(sb, (tb // sb) * sb)                        # tb multiple of sb
        n_bgrp = tb // sb
        n_rgrp = tr // sr
        need_mask = (r % tr) != 0
        num_batch_blocks = (n + tb - 1) // tb
        assert sr % 8 == 0 and tr % sr == 0 and tb % sb == 0

        # 2 inputs x 2 pipeline buffers x tile + 2 output buffers + headroom;
        # clamped below v7x's 64 MiB physical VMEM.
        in_tile_bytes = tb * tr * 128 * itemsize
        out_tile_bytes = tb * 8 * 128 * 4
        vmem_limit = 2 * 2 * in_tile_bytes + 2 * out_tile_bytes + (4 << 20)
        vmem_limit = int(min(max(vmem_limit, 16 << 20), 48 << 20))

        kernel = functools.partial(
            _sse_kernel, sb=sb, sr=sr, r=r, tr=tr, n_bgrp=n_bgrp,
            n_rgrp=n_rgrp, need_mask=need_mask,
            unroll=bool(n_bgrp * n_rgrp <= 8))

        # TODO(synk): optional v7x-only chunk-axis "parallel" split (2 TCs) for
        # n == 1 / odd-n calls; batch-axis parallelism covers the common case.
        out = pl.pallas_call(
            kernel,
            out_shape=jax.ShapeDtypeStruct((n, 8, 128), jnp.float32),
            grid_spec=pltpu.PrefetchScalarGridSpec(
                num_scalar_prefetch=0,
                grid=(num_batch_blocks, num_chunks),
                in_specs=[
                    pl.BlockSpec((tb, tr, 128), lambda i, k: (i, k, 0)),
                    pl.BlockSpec((tb, tr, 128), lambda i, k: (i, k, 0)),
                ],
                out_specs=pl.BlockSpec((tb, 8, 128), lambda i, k: (i, 0, 0)),
            ),
            compiler_params=pltpu.CompilerParams(
                dimension_semantics=("parallel", "arbitrary"),
                vmem_limit_bytes=vmem_limit,
            ),
            cost_estimate=pl.CostEstimate(
                flops=3 * n * m_pad,
                transcendentals=0,
                bytes_accessed=2 * n * m_pad * itemsize + n * 8 * 128 * 4,
            ),
        )(x, y)

        # Tiny JAX epilogue on (N,) values: SSE -> MSE -> PSNR -> batch mean.
        sse = jnp.sum(out, axis=(1, 2))                      # per-sample SSE
        mse = sse * (self.scale ** 2) * (1.0 / float(m))     # per-sample MSE
        psnr = self._psnr_const - (10.0 / math.log(10.0)) * jnp.log(mse)
        return jnp.mean(psnr)


# -----------------------------------------------------------------------------
# Pure-JAX reference (full denorm path, validates the algebraic fold too)
# -----------------------------------------------------------------------------
def _ref_psnr(output, target, scale, shift, diff):
    x = output.astype(jnp.float32) * scale + shift
    y = target.astype(jnp.float32) * scale + shift
    mse = jnp.mean((x - y) ** 2, axis=(1, 2, 3, 4))
    psnr = 10.0 * jnp.log10(diff ** 2.0 / mse)
    return jnp.mean(psnr)


if __name__ == "__main__":
    mean_std_norm = {"mean": 0.5, "std": 2.0}
    min_max_norm = {"min": 0.0, "max": 1.0}

    metrics = MetricsPallas(
        norm_method="mean_std",
        mean_std_norm=mean_std_norm,
        min_max_norm=min_max_norm,
    )
    shift = float(mean_std_norm["mean"])

    key = jax.random.PRNGKey(0)
    keys = jax.random.split(key, 8)

    def check(out, tgt, m, tag):
        got = jax.block_until_ready(m(out, tgt))
        ref = _ref_psnr(out, tgt, m.scale, shift, m.diff)
        assert jnp.allclose(got, ref, rtol=5e-4, atol=5e-4), (tag, got, ref)

    # Case 1: small 5-D volume -> batch-blocked single step (r=64, tb=2).
    shape1 = (2, 4, 8, 16, 16)
    check(jax.random.normal(keys[0], shape1, jnp.float32),
          jax.random.normal(keys[1], shape1, jnp.float32), metrics, "case1")

    # Case 2: bf16 inputs -> native-dtype DMA, in-kernel widening, sub-slab loop.
    shape2 = (2, 8, 32, 32, 32)
    check(jax.random.normal(keys[2], shape2, jnp.float32).astype(jnp.bfloat16),
          jax.random.normal(keys[3], shape2, jnp.float32).astype(jnp.bfloat16),
          metrics, "case2")

    # Case 3: r=9 (not a multiple of 8), odd batch -> masked-tail rows path.
    shape3 = (3, 1, 3, 12, 32)
    check(jax.random.normal(keys[4], shape3, jnp.float32),
          jax.random.normal(keys[5], shape3, jnp.float32), metrics, "case3")

    # Case 4: force multi-chunk reduction + tail mask at a small shape by
    # shrinking the per-step byte budget (r=2304 -> 3 chunks of 1024 rows).
    metrics_small = MetricsPallas(
        norm_method="mean_std",
        mean_std_norm=mean_std_norm,
        min_max_norm=min_max_norm,
    )
    metrics_small._target_step_bytes = 1 << 18
    shape4 = (2, 8, 36, 32, 32)
    check(jax.random.normal(keys[6], shape4, jnp.float32),
          jax.random.normal(keys[7], shape4, jnp.float32),
          metrics_small, "case4")

    print("KERNEL_OK")
</pallas_src>

<mosaic_0001>
module attributes {stable_mosaic.version = 11 : i64} {
  func.func @_sse_kernel(%arg0: i32, %arg1: i32, %arg2: memref<2x64x128xf32, #tpu.memory_space<vmem>>, %arg3: memref<2x64x128xf32, #tpu.memory_space<vmem>>, %arg4: memref<2x8x128xf32, #tpu.memory_space<vmem>>) attributes {dimension_semantics = [#tpu.dimension_semantics<parallel>, #tpu.dimension_semantics<arbitrary>], iteration_bounds = array<i64: 1, 1>, scalar_prefetch = 0 : i64, scratch_operands = 0 : i64, tpu.core_type = #tpu.core_type<tc>, window_params = [{transform_indices = @transform_0, window_bounds = array<i64: 2, 64, 128>}, {transform_indices = @transform_1, window_bounds = array<i64: 2, 64, 128>}, {transform_indices = @transform_2, window_bounds = array<i64: 2, 8, 128>}]} {
    %c0_i32 = arith.constant 0 : i32
    %0 = arith.cmpi eq, %arg1, %c0_i32 : i32
    %1 = arith.extui %0 : i1 to i32
    %c0_i32_0 = arith.constant 0 : i32
    %2 = arith.cmpi ne, %1, %c0_i32_0 : i32
    scf.if %2 {
      %cst_12 = arith.constant 0.000000e+00 : f32
      %12 = vector.broadcast %cst_12 : f32 to vector<2x8x128xf32>
      %c0_13 = arith.constant 0 : index
      %c0_14 = arith.constant 0 : index
      %c0_15 = arith.constant 0 : index
      %13 = vector.load %arg4[%c0_13, %c0_14, %c0_15] : memref<2x8x128xf32, #tpu.memory_space<vmem>>, vector<2x8x128xf32>
      tpu.vector_store %arg4[%c0_13, %c0_14, %c0_15], %12 {strides = array<i32>} : memref<2x8x128xf32, #tpu.memory_space<vmem>>, vector<2x8x128xf32>,
    } else {
    }
    %c0 = arith.constant 0 : index
    %c0_1 = arith.constant 0 : index
    %c0_2 = arith.constant 0 : index
    %3 = vector.load %arg4[%c0, %c0_1, %c0_2] : memref<2x8x128xf32, #tpu.memory_space<vmem>>, vector<2x8x128xf32>
    %c0_3 = arith.constant 0 : index
    %c0_4 = arith.constant 0 : index
    %c0_5 = arith.constant 0 : index
    %4 = vector.load %arg2[%c0_3, %c0_4, %c0_5] : memref<2x64x128xf32, #tpu.memory_space<vmem>>, vector<2x64x128xf32>
    %c0_6 = arith.constant 0 : index
    %c0_7 = arith.constant 0 : index
    %c0_8 = arith.constant 0 : index
    %5 = vector.load %arg3[%c0_6, %c0_7, %c0_8] : memref<2x64x128xf32, #tpu.memory_space<vmem>>, vector<2x64x128xf32>
    %6 = arith.subf %4, %5 : vector<2x64x128xf32>
    %7 = arith.mulf %6, %6 : vector<2x64x128xf32>
    %8 = vector.shape_cast %7 : vector<2x64x128xf32> to vector<2x8x8x128xf32>
    %cst = arith.constant dense<0.000000e+00> : vector<2x8x128xf32>
    %9 = vector.multi_reduction <add>, %8, %cst [1] : vector<2x8x8x128xf32> to vector<2x8x128xf32>
    %10 = arith.addf %3, %9 : vector<2x8x128xf32>
    %c0_9 = arith.constant 0 : index
    %c0_10 = arith.constant 0 : index
    %c0_11 = arith.constant 0 : index
    %11 = vector.load %arg4[%c0_9, %c0_10, %c0_11] : memref<2x8x128xf32, #tpu.memory_space<vmem>>, vector<2x8x128xf32>
    tpu.vector_store %arg4[%c0_9, %c0_10, %c0_11], %10 {strides = array<i32>} : memref<2x8x128xf32, #tpu.memory_space<vmem>>, vector<2x8x128xf32>,
    return
  }
  func.func @transform_0(%arg0: i32, %arg1: i32) -> (i32, i32, i32) {
    %c0_i32 = arith.constant 0 : i32
    %c0_i32_0 = arith.constant 0 : i32
    return %arg0, %arg1, %c0_i32 : i32, i32, i32
  }
  func.func @transform_1(%arg0: i32, %arg1: i32) -> (i32, i32, i32) {
    %c0_i32 = arith.constant 0 : i32
    %c0_i32_0 = arith.constant 0 : i32
    return %arg0, %arg1, %c0_i32 : i32, i32, i32
  }
  func.func @transform_2(%arg0: i32, %arg1: i32) -> (i32, i32, i32) {
    %c0_i32 = arith.constant 0 : i32
    %c0_i32_0 = arith.constant 0 : i32
    %c0_i32_1 = arith.constant 0 : i32
    return %arg0, %c0_i32, %c0_i32_0 : i32, i32, i32
  }
}

</mosaic_0001>

<llo_original>
// kernel: tpu_custom_call.1
$region0: #{tpu_custom_call.1}
  #allocation0 [shape = 'u32[]', space=smem, size = 0x4, offset = 0x4, fixed_abs, tag = 'smem constant byte address 0x4 - core index']
  #allocation1 [shape = 'u32[144,128]{1,0:T(1,128)}', space=vmem, size = 0x12000, scoped, tag = 'internal scratch']
  %s0 = inlined_call_operand.hbm [shape: f32[2,64,128], index: 0, kind: input, shape index: {}]
  %s1 = inlined_call_operand.hbm [shape: f32[2,64,128], index: 1, kind: input, shape index: {}]
  %s2 = inlined_call_operand.hbm [shape: f32[2,8,128], index: 2, kind: output, shape index: {}]
  %s3 = sld [smem:[#allocation0]]
  $region30: #{tpu_custom_call.1} parent=0
    _
  %s5 = ssub.s32 1, %s3
  %s6 = scalar_select 0, %s5, %s3
  $region1: #{tpu_custom_call.1} parent=0
    #allocation2 [shape = 'u8[65536]{0}', space=vmem, size = 0x10000, scoped, tag = 'input window, operand 0, single buffered']
    #allocation3 [shape = 's32[1]{0}', space=sflag, size = 0x4, scoped, tag = 'scoped memory for tpu_custom_call.1']
    #allocation4 [shape = 's32[1]{0}', space=sflag, size = 0x4, scoped, tag = 'scoped memory for tpu_custom_call.1']
    #allocation5 [shape = 'u8[65536]{0}', space=vmem, size = 0x10000, scoped, tag = 'input window, operand 1, single buffered']
    #allocation6 [shape = 's32[1]{0}', space=sflag, size = 0x4, scoped, tag = 'scoped memory for tpu_custom_call.1']
    #allocation7 [shape = 'u8[8192]{0}', space=vmem, size = 0x2000, scoped, tag = 'output window, operand 0, single buffered']
    %7 = vsyncpa [#allocation3], 0
    %8 = vsyncpa [#allocation6], 0
    %9 = vsyncpa [#allocation4], 0
    // Predicated region
    $region2: #{tpu_custom_call.1} parent=1 // pred_check
      _
    $region3: #{tpu_custom_call.1} parent=1 // pred_check_branch
      %11 = sbr.rel (0) target = $region5
    $region4: #{tpu_custom_call.1} parent=1 // pred_region
      %s13 = ssub.s32 2048, 2048
      %14 = vsyncadd [#allocation3], %s13
      %s15 = sshll.u32 [#allocation2], 4
      %s16 = int_to_ptr.vmem [resolvable:$true] %s15
      %21 = dma.hbm_to_vmem [thread:$0]  %s0, 2048, %s16, [#allocation3], 128, 128, 8
    $region5: #{tpu_custom_call.1} parent=1 // pred_fallthru
      _
    // Predicated region
    $region6: #{tpu_custom_call.1} parent=1 // pred_check
      _
    $region7: #{tpu_custom_call.1} parent=1 // pred_check_branch
      %23 = sbr.rel (0) target = $region9
    $region8: #{tpu_custom_call.1} parent=1 // pred_region
      %s25 = ssub.s32 2048, 2048
      %26 = vsyncadd [#allocation6], %s25
      %s27 = sshll.u32 [#allocation5], 4
      %s28 = int_to_ptr.vmem [resolvable:$true] %s27
      %33 = dma.hbm_to_vmem [thread:$0]  %s1, 2048, %s28, [#allocation6], 128, 128, 8
    $region9: #{tpu_custom_call.1} parent=1 // pred_fallthru
      _
    // Predicated region
    $region10: #{tpu_custom_call.1} parent=1 // pred_check
      _
    $region11: #{tpu_custom_call.1} parent=1 // pred_check_branch
      %35 = sbr.rel (0) target = $region13
    $region12: #{tpu_custom_call.1} parent=1 // pred_region
      %36 = dma.done [#allocation3], 2048
    $region13: #{tpu_custom_call.1} parent=1 // pred_fallthru
      _
    // Predicated region
    $region14: #{tpu_custom_call.1} parent=1 // pred_check
      _
    $region15: #{tpu_custom_call.1} parent=1 // pred_check_branch
      %38 = sbr.rel (0) target = $region17
    $region16: #{tpu_custom_call.1} parent=1 // pred_region
      %39 = dma.done [#allocation6], 2048
    $region17: #{tpu_custom_call.1} parent=1 // pred_fallthru
      _
    %p40 = scmp.eq.s32.totalorder 0, 0
    // Predicated region
    $region18: #{tpu_custom_call.1} parent=1 // pred_check
      %p41 = pneg %p40
    $region19: #{tpu_custom_call.1} parent=1 // pred_check_branch
      %43 = sbr.rel (%p41) target = $region21
    $region20: #{tpu_custom_call.1} parent=1 // pred_region
      %44 = vst [vmem:[#allocation7] sm:$0xff] 0.0
      %45 = vst [vmem:[#allocation7 + $0x8] sm:$0xff] 0.0
    $region21: #{tpu_custom_call.1} parent=1 // pred_fallthru
      _
    %v46 = vld [vmem:[#allocation7] sm:$0xff]
    %v47 = vld [vmem:[#allocation7 + $0x8] sm:$0xff]
    %v48 = vld [vmem:[#allocation2] sm:$0xff]
    %v49 = vld [vmem:[#allocation2 + $0x8] sm:$0xff]
    %v50 = vld [vmem:[#allocation2 + $0x10] sm:$0xff]
    %v51 = vld [vmem:[#allocation2 + $0x18] sm:$0xff]
    %v52 = vld [vmem:[#allocation2 + $0x20] sm:$0xff]
    %v53 = vld [vmem:[#allocation2 + $0x28] sm:$0xff]
    %v54 = vld [vmem:[#allocation2 + $0x30] sm:$0xff]
    %v55 = vld [vmem:[#allocation2 + $0x38] sm:$0xff]
    %v56 = vld [vmem:[#allocation2 + $0x40] sm:$0xff]
    %v57 = vld [vmem:[#allocation2 + $0x48] sm:$0xff]
    %v58 = vld [vmem:[#allocation2 + $0x50] sm:$0xff]
    %v59 = vld [vmem:[#allocation2 + $0x58] sm:$0xff]
    %v60 = vld [vmem:[#allocation2 + $0x60] sm:$0xff]
    %v61 = vld [vmem:[#allocation2 + $0x68] sm:$0xff]
    %v62 = vld [vmem:[#allocation2 + $0x70] sm:$0xff]
    %v63 = vld [vmem:[#allocation2 + $0x78] sm:$0xff]
    %v64 = vld [vmem:[#allocation5] sm:$0xff]
    %v65 = vld [vmem:[#allocation5 + $0x8] sm:$0xff]
    %v66 = vld [vmem:[#allocation5 + $0x10] sm:$0xff]
    %v67 = vld [vmem:[#allocation5 + $0x18] sm:$0xff]
    %v68 = vld [vmem:[#allocation5 + $0x20] sm:$0xff]
    %v69 = vld [vmem:[#allocation5 + $0x28] sm:$0xff]
    %v70 = vld [vmem:[#allocation5 + $0x30] sm:$0xff]
    %v71 = vld [vmem:[#allocation5 + $0x38] sm:$0xff]
    %v72 = vld [vmem:[#allocation5 + $0x40] sm:$0xff]
    %v73 = vld [vmem:[#allocation5 + $0x48] sm:$0xff]
    %v74 = vld [vmem:[#allocation5 + $0x50] sm:$0xff]
    %v75 = vld [vmem:[#allocation5 + $0x58] sm:$0xff]
    %v76 = vld [vmem:[#allocation5 + $0x60] sm:$0xff]
    %v77 = vld [vmem:[#allocation5 + $0x68] sm:$0xff]
    %v78 = vld [vmem:[#allocation5 + $0x70] sm:$0xff]
    %v79 = vld [vmem:[#allocation5 + $0x78] sm:$0xff]
    %v80 = vsub.f32 %v48, %v64
    %v81 = vsub.f32 %v49, %v65
    %v82 = vsub.f32 %v50, %v66
    %v83 = vsub.f32 %v51, %v67
    %v84 = vsub.f32 %v52, %v68
    %v85 = vsub.f32 %v53, %v69
    %v86 = vsub.f32 %v54, %v70
    %v87 = vsub.f32 %v55, %v71
    %v88 = vsub.f32 %v56, %v72
    %v89 = vsub.f32 %v57, %v73
    %v90 = vsub.f32 %v58, %v74
    %v91 = vsub.f32 %v59, %v75
    %v92 = vsub.f32 %v60, %v76
    %v93 = vsub.f32 %v61, %v77
    %v94 = vsub.f32 %v62, %v78
    %v95 = vsub.f32 %v63, %v79
    %v96 = vmul.f32 %v80, %v80
    %v97 = vmul.f32 %v81, %v81
    %v98 = vmul.f32 %v82, %v82
    %v99 = vmul.f32 %v83, %v83
    %v100 = vmul.f32 %v84, %v84
    %v101 = vmul.f32 %v85, %v85
    %v102 = vmul.f32 %v86, %v86
    %v103 = vmul.f32 %v87, %v87
    %v104 = vmul.f32 %v88, %v88
    %v105 = vmul.f32 %v89, %v89
    %v106 = vmul.f32 %v90, %v90
    %v107 = vmul.f32 %v91, %v91
    %v108 = vmul.f32 %v92, %v92
    %v109 = vmul.f32 %v93, %v93
    %v110 = vmul.f32 %v94, %v94
    %v111 = vmul.f32 %v95, %v95
    %v112 = vadd.f32 %v96, %v97
    %v113 = vadd.f32 %v112, %v98
    %v114 = vadd.f32 %v113, %v99
    %v115 = vadd.f32 %v114, %v100
    %v116 = vadd.f32 %v115, %v101
    %v117 = vadd.f32 %v116, %v102
    %v118 = vadd.f32 %v117, %v103
    %v119 = vadd.f32 %v104, %v105
    %v120 = vadd.f32 %v119, %v106
    %v121 = vadd.f32 %v120, %v107
    %v122 = vadd.f32 %v121, %v108
    %v123 = vadd.f32 %v122, %v109
    %v124 = vadd.f32 %v123, %v110
    %v125 = vadd.f32 %v124, %v111
    %v126 = vadd.f32 %v46, %v118
    %v127 = vadd.f32 %v47, %v125
    %128 = vst [vmem:[#allocation7] sm:$0xff] %v126
    %129 = vst [vmem:[#allocation7 + $0x8] sm:$0xff] %v127
    // Predicated region
    $region22: #{tpu_custom_call.1} parent=1 // pred_check
      _
    $region23: #{tpu_custom_call.1} parent=1 // pred_check_branch
      %131 = sbr.rel (0) target = $region25
    $region24: #{tpu_custom_call.1} parent=1 // pred_region
      %s133 = ssub.s32 256, 256
      %134 = vsyncadd [#allocation4], %s133
      %s135 = sshll.u32 [#allocation7], 4
      %s136 = int_to_ptr.vmem [resolvable:$true] %s135
      %141 = dma.vmem_to_hbm [thread:$0]  %s136, 256, %s2, [#allocation4], 128, 128, 8
    $region25: #{tpu_custom_call.1} parent=1 // pred_fallthru
      _
    // Predicated region
    $region26: #{tpu_custom_call.1} parent=1 // pred_check
      _
    $region27: #{tpu_custom_call.1} parent=1 // pred_check_branch
      %143 = sbr.rel (0) target = $region29
    $region28: #{tpu_custom_call.1} parent=1 // pred_region
      %144 = dma.done [#allocation4], 256
    $region29: #{tpu_custom_call.1} parent=1 // pred_fallthru
      _
    %145 = vsyncpa [#allocation3], 1
    %146 = vsyncpa [#allocation6], 1
    %147 = vsyncpa [#allocation4], 1

</llo_original>
